<compile_context>
chip_gen: v5e
topology: v5e:2x2
jax: 0.10.0
libtpu: 0.0.40
codegen_flags: <defaults>
</compile_context>

<pallas_src>
import functools

import jax
import jax.numpy as jnp
from jax.experimental import pallas as pl
from jax.experimental.pallas import tpu as pltpu

LANE = 128        # vreg lane width (last dim)
ROW_ALIGN = 16    # batch-tile rounding (bf16-safe sublane multiple; f32 needs 8)
MAX_TILE_B = 8192 # VMEM-safe upper bound for the batch tile (fits v7x 32 MiB scoped)


def _round_up(n, m):
    return ((n + m - 1) // m) * m


def dqn_mlp_kernel(x_ref, w1_ref, b1_ref, w2_ref, b2_ref, o_ref):
    # Hidden layer: h = tanh(x @ W1 + b1) — f32 matmul, f32 accumulate, EUP tanh.
    h = jnp.dot(x_ref[...], w1_ref[...], preferred_element_type=jnp.float32)
    h = jnp.tanh(h + b1_ref[...])
    # Output layer: logits = h @ W2 + b2 (narrow N=8, masked store is fine).
    logits = jnp.dot(h, w2_ref[...], preferred_element_type=jnp.float32)
    o_ref[...] = (logits + b2_ref[...]).astype(o_ref.dtype)


def init_params(key, layer_sizes):
    """nn.Linear-style init (uniform(-1/sqrt(fan_in), +1/sqrt(fan_in))), logical shapes.

    Weights are stored already transposed to [in, out] for x @ W.
    """
    in_size, hidden_size, out_size = layer_sizes
    k1, k2, k3, k4 = jax.random.split(key, 4)
    bound1 = 1.0 / jnp.sqrt(in_size)
    bound2 = 1.0 / jnp.sqrt(hidden_size)
    w1 = jax.random.uniform(k1, (in_size, hidden_size), jnp.float32, -bound1, bound1)
    b1 = jax.random.uniform(k2, (1, hidden_size), jnp.float32, -bound1, bound1)
    w2 = jax.random.uniform(k3, (hidden_size, out_size), jnp.float32, -bound2, bound2)
    b2 = jax.random.uniform(k4, (1, out_size), jnp.float32, -bound2, bound2)
    return w1, b1, w2, b2


def pad_params(w1, b1, w2, b2):
    """Pad only the weight-side dims (done once; weights are tiny & VMEM-resident).

    - input dim stays at its logical size (x is passed unpadded),
    - hidden dim -> 128 lanes (zero cols/rows => exact),
    - output dim -> 8 lanes (narrow masked store on the way out).
    Everything stays f32.
    """
    in_s, hid = w1.shape
    out_s = w2.shape[1]
    hid_p = _round_up(hid, LANE)
    out_p = _round_up(out_s, 8)
    w1p = jnp.zeros((in_s, hid_p), jnp.float32).at[:, :hid].set(w1)
    b1p = jnp.zeros((1, hid_p), jnp.float32).at[:, :hid].set(b1)
    w2p = jnp.zeros((hid_p, out_p), jnp.float32).at[:hid, :out_s].set(w2)
    b2p = jnp.zeros((1, out_p), jnp.float32).at[:, :out_s].set(b2)
    return w1p, b1p, w2p, b2p


@functools.partial(jax.jit, static_argnames=("out_size", "tile_b"))
def dqn_forward(x, w1p, b1p, w2p, b2p, *, out_size, tile_b=4096):
    """DQNv2 forward: logical x [B, in] f32 + padded params -> [B, out_size] f32 logits."""
    B, in_s = x.shape
    hid_p = w1p.shape[1]
    out_p = w2p.shape[1]

    # Batch tile: big enough to amortize per-step overhead, capped so that
    #  (a) there are >=2 grid steps when possible (feeds both v7x TensorCores),
    #  (b) VMEM stays comfortably inside the v7x scoped limit.
    half = _round_up(max((B + 1) // 2, 1), ROW_ALIGN)
    tb = min(_round_up(min(tile_b, MAX_TILE_B), ROW_ALIGN), half)
    tb = max(tb, ROW_ALIGN)
    grid = (pl.cdiv(B, tb),)

    flops = 2 * B * (in_s * hid_p + hid_p * out_p)
    bytes_accessed = (B * in_s * 4 + B * out_p * 4
                      + (w1p.size + w2p.size + b1p.size + b2p.size) * 4)

    out = pl.pallas_call(
        dqn_mlp_kernel,
        out_shape=jax.ShapeDtypeStruct((B, out_p), jnp.float32),
        grid_spec=pltpu.PrefetchScalarGridSpec(
            num_scalar_prefetch=0,
            grid=grid,
            in_specs=[
                pl.BlockSpec((tb, in_s), lambda i: (i, 0)),       # x: tiled over batch, unpadded
                pl.BlockSpec((in_s, hid_p), lambda i: (0, 0)),    # W1: VMEM-resident
                pl.BlockSpec((1, hid_p), lambda i: (0, 0)),       # b1: VMEM-resident
                pl.BlockSpec((hid_p, out_p), lambda i: (0, 0)),   # W2: VMEM-resident
                pl.BlockSpec((1, out_p), lambda i: (0, 0)),       # b2: VMEM-resident
            ],
            out_specs=pl.BlockSpec((tb, out_p), lambda i: (i, 0)),  # narrow (8-lane) output
        ),
        compiler_params=pltpu.CompilerParams(
            dimension_semantics=("parallel",),   # shard batch grid across TCs on v7x
        ),
        cost_estimate=pl.CostEstimate(
            flops=flops,
            transcendentals=B * hid_p,
            bytes_accessed=bytes_accessed,
        ),
    )(x, w1p, b1p, w2p, b2p)

    # Drop padded logit columns (6 real logits out of 8 stored lanes).
    return out[:, :out_size]


def reference_forward(x, w1, b1, w2, b2):
    """Pure-JAX f32 reference (same math as the PyTorch module)."""
    hp = jax.lax.Precision.HIGHEST
    h = jnp.tanh(jnp.dot(x, w1, precision=hp) + b1)
    return jnp.dot(h, w2, precision=hp) + b2


if __name__ == "__main__":
    # DQNv2(lr, layer_sizes=[input, hidden, output]) — slime-volley-style sizes.
    layer_sizes = [12, 32, 6]   # state dim 12, hidden 32, 6 actions
    lr = 1e-3                   # TODO(synk): learning rate / optimizer are training-side; forward only here.

    key = jax.random.PRNGKey(0)
    kx, kp, kx2 = jax.random.split(key, 3)

    w1, b1, w2, b2 = init_params(kp, layer_sizes)
    w1p, b1p, w2p, b2p = pad_params(w1, b1, w2, b2)

    # Small rollout-style batch (exercises a single partial block).
    batch = 8
    x = jax.random.normal(kx, (batch, layer_sizes[0]), jnp.float32)
    out = jax.block_until_ready(
        dqn_forward(x, w1p, b1p, w2p, b2p, out_size=layer_sizes[2]))
    ref = reference_forward(x, w1, b1, w2, b2)
    assert out.shape == (batch, layer_sizes[2])
    assert jnp.allclose(out, ref, atol=1e-2, rtol=1e-2), float(jnp.max(jnp.abs(out - ref)))

    # Larger, non-tile-multiple batch: exercises multi-step grid + partial last block.
    batch2 = 200
    x2 = jax.random.normal(kx2, (batch2, layer_sizes[0]), jnp.float32)
    out2 = jax.block_until_ready(
        dqn_forward(x2, w1p, b1p, w2p, b2p, out_size=layer_sizes[2], tile_b=64))
    ref2 = reference_forward(x2, w1, b1, w2, b2)
    assert out2.shape == (batch2, layer_sizes[2])
    assert jnp.allclose(out2, ref2, atol=1e-2, rtol=1e-2), float(jnp.max(jnp.abs(out2 - ref2)))

    print("KERNEL_OK")
</pallas_src>

<mosaic_0001>
module attributes {stable_mosaic.version = 11 : i64} {
  func.func @dqn_mlp_kernel(%arg0: i32, %arg1: memref<16x12xf32, #tpu.memory_space<vmem>>, %arg2: memref<12x128xf32, #tpu.memory_space<vmem>>, %arg3: memref<1x128xf32, #tpu.memory_space<vmem>>, %arg4: memref<128x8xf32, #tpu.memory_space<vmem>>, %arg5: memref<1x8xf32, #tpu.memory_space<vmem>>, %arg6: memref<16x8xf32, #tpu.memory_space<vmem>>) attributes {dimension_semantics = [#tpu.dimension_semantics<parallel>], iteration_bounds = array<i64: 1>, scalar_prefetch = 0 : i64, scratch_operands = 0 : i64, tpu.core_type = #tpu.core_type<tc>, window_params = [{transform_indices = @transform_0, window_bounds = array<i64: 16, 12>}, {pipeline_mode = #tpu.pipeline_mode<synchronous>, transform_indices = @transform_1, window_bounds = array<i64: 12, 128>}, {pipeline_mode = #tpu.pipeline_mode<synchronous>, transform_indices = @transform_2, window_bounds = array<i64: 1, 128>}, {pipeline_mode = #tpu.pipeline_mode<synchronous>, transform_indices = @transform_3, window_bounds = array<i64: 128, 8>}, {pipeline_mode = #tpu.pipeline_mode<synchronous>, transform_indices = @transform_4, window_bounds = array<i64: 1, 8>}, {transform_indices = @transform_5, window_bounds = array<i64: 16, 8>}]} {
    %c0 = arith.constant 0 : index
    %c0_0 = arith.constant 0 : index
    %0 = vector.load %arg1[%c0, %c0_0] : memref<16x12xf32, #tpu.memory_space<vmem>>, vector<16x12xf32>
    %c0_1 = arith.constant 0 : index
    %c0_2 = arith.constant 0 : index
    %1 = vector.load %arg2[%c0_1, %c0_2] : memref<12x128xf32, #tpu.memory_space<vmem>>, vector<12x128xf32>
    %cst = arith.constant dense<0.000000e+00> : vector<16x128xf32>
    %2 = tpu.matmul %0, %1, %cst {dimension_numbers = #tpu.dot_dimension_numbers<[1], [0], [0], [1], [0, 0, 1, 1], [], []>} : vector<16x12xf32>, vector<12x128xf32>, vector<16x128xf32> -> vector<16x128xf32>
    %c0_3 = arith.constant 0 : index
    %c0_4 = arith.constant 0 : index
    %3 = vector.load %arg3[%c0_3, %c0_4] : memref<1x128xf32, #tpu.memory_space<vmem>>, vector<1x128xf32>
    %4 = vector.broadcast %3 : vector<1x128xf32> to vector<16x128xf32>
    %5 = arith.addf %2, %4 : vector<16x128xf32>
    %6 = math.tanh %5 : vector<16x128xf32>
    %c0_5 = arith.constant 0 : index
    %c0_6 = arith.constant 0 : index
    %7 = vector.load %arg4[%c0_5, %c0_6] : memref<128x8xf32, #tpu.memory_space<vmem>>, vector<128x8xf32>
    %cst_7 = arith.constant dense<0.000000e+00> : vector<16x8xf32>
    %8 = tpu.matmul %6, %7, %cst_7 {dimension_numbers = #tpu.dot_dimension_numbers<[1], [0], [0], [1], [0, 0, 1, 1], [], []>} : vector<16x128xf32>, vector<128x8xf32>, vector<16x8xf32> -> vector<16x8xf32>
    %c0_8 = arith.constant 0 : index
    %c0_9 = arith.constant 0 : index
    %9 = vector.load %arg5[%c0_8, %c0_9] : memref<1x8xf32, #tpu.memory_space<vmem>>, vector<1x8xf32>
    %10 = vector.broadcast %9 : vector<1x8xf32> to vector<16x8xf32>
    %11 = arith.addf %8, %10 : vector<16x8xf32>
    %c0_10 = arith.constant 0 : index
    %c0_11 = arith.constant 0 : index
    %12 = vector.load %arg6[%c0_10, %c0_11] : memref<16x8xf32, #tpu.memory_space<vmem>>, vector<16x8xf32>
    tpu.vector_store %arg6[%c0_10, %c0_11], %11 {strides = array<i32>} : memref<16x8xf32, #tpu.memory_space<vmem>>, vector<16x8xf32>,
    return
  }
  func.func @transform_0(%arg0: i32) -> (i32, i32) {
    %c0_i32 = arith.constant 0 : i32
    %c0_i32_0 = arith.constant 0 : i32
    return %arg0, %c0_i32 : i32, i32
  }
  func.func @transform_1(%arg0: i32) -> (i32, i32) {
    %c0_i32 = arith.constant 0 : i32
    %c0_i32_0 = arith.constant 0 : i32
    %c0_i32_1 = arith.constant 0 : i32
    return %c0_i32, %c0_i32_0 : i32, i32
  }
  func.func @transform_2(%arg0: i32) -> (i32, i32) {
    %c0_i32 = arith.constant 0 : i32
    %c0_i32_0 = arith.constant 0 : i32
    %c0_i32_1 = arith.constant 0 : i32
    return %c0_i32, %c0_i32_0 : i32, i32
  }
  func.func @transform_3(%arg0: i32) -> (i32, i32) {
    %c0_i32 = arith.constant 0 : i32
    %c0_i32_0 = arith.constant 0 : i32
    %c0_i32_1 = arith.constant 0 : i32
    return %c0_i32, %c0_i32_0 : i32, i32
  }
  func.func @transform_4(%arg0: i32) -> (i32, i32) {
    %c0_i32 = arith.constant 0 : i32
    %c0_i32_0 = arith.constant 0 : i32
    %c0_i32_1 = arith.constant 0 : i32
    return %c0_i32, %c0_i32_0 : i32, i32
  }
  func.func @transform_5(%arg0: i32) -> (i32, i32) {
    %c0_i32 = arith.constant 0 : i32
    %c0_i32_0 = arith.constant 0 : i32
    return %arg0, %c0_i32 : i32, i32
  }
}

</mosaic_0001>

<llo_original>
// kernel: dqn_forward.1
$region0: #{dqn_forward.1}
  #allocation0 [shape = 'u32[]', space=smem, size = 0x4, offset = 0x4, fixed_abs, tag = 'smem constant byte address 0x4 - core index']
  #allocation1 [shape = 'u32[72,128]{1,0:T(1,128)}', space=vmem, size = 0x9000, scoped, tag = 'internal scratch']
  %s0 = inlined_call_operand.vmem [shape: f32[8,12], index: 0, kind: input, shape index: {}]
  %s1 = inlined_call_operand.vmem [shape: f32[12,128], index: 1, kind: input, shape index: {}]
  %s2 = inlined_call_operand.vmem [shape: f32[1,128], index: 2, kind: input, shape index: {}]
  %s3 = inlined_call_operand.vmem [shape: f32[128,8], index: 3, kind: input, shape index: {}]
  %s4 = inlined_call_operand.vmem [shape: f32[1,8], index: 4, kind: input, shape index: {}]
  %s5 = inlined_call_operand.hbm [shape: f32[8,8], index: 5, kind: output, shape index: {}]
  %s6 = sld [smem:[#allocation0]]
  $region30: #{dqn_forward.1} parent=0
    _
  %s8 = ssub.s32 1, %s6
  %s9 = scalar_select 0, %s8, %s6
  $region1: #{dqn_forward.1} parent=0
    #allocation2 [shape = 'u8[8192]{0}', space=vmem, size = 0x2000, scoped, tag = 'output window, operand 0, single buffered']
    #allocation3 [shape = 's32[1]{0}', space=sflag, size = 0x4, scoped, tag = 'scoped memory for dqn_forward.1']
    %10 = vsyncpa [#allocation3], 0
    // Predicated region
    $region2: #{dqn_forward.1} parent=1 // pred_check
      _
    $region3: #{dqn_forward.1} parent=1 // pred_check_branch
      %12 = sbr.rel (0) target = $region5
    $region4: #{dqn_forward.1} parent=1 // pred_region
      _
    $region5: #{dqn_forward.1} parent=1 // pred_fallthru
      _
    // Predicated region
    $region6: #{dqn_forward.1} parent=1 // pred_check
      _
    $region7: #{dqn_forward.1} parent=1 // pred_check_branch
      %14 = sbr.rel (0) target = $region9
    $region8: #{dqn_forward.1} parent=1 // pred_region
      _
    $region9: #{dqn_forward.1} parent=1 // pred_fallthru
      _
    // Predicated region
    $region10: #{dqn_forward.1} parent=1 // pred_check
      _
    $region11: #{dqn_forward.1} parent=1 // pred_check_branch
      %16 = sbr.rel (0) target = $region13
    $region12: #{dqn_forward.1} parent=1 // pred_region
      _
    $region13: #{dqn_forward.1} parent=1 // pred_fallthru
      _
    // Predicated region
    $region14: #{dqn_forward.1} parent=1 // pred_check
      _
    $region15: #{dqn_forward.1} parent=1 // pred_check_branch
      %18 = sbr.rel (0) target = $region17
    $region16: #{dqn_forward.1} parent=1 // pred_region
      _
    $region17: #{dqn_forward.1} parent=1 // pred_fallthru
      _
    // Predicated region
    $region18: #{dqn_forward.1} parent=1 // pred_check
      _
    $region19: #{dqn_forward.1} parent=1 // pred_check_branch
      %20 = sbr.rel (0) target = $region21
    $region20: #{dqn_forward.1} parent=1 // pred_region
      _
    $region21: #{dqn_forward.1} parent=1 // pred_fallthru
      _
    %v21 = vld [vmem:[%s0] sm:$0xff]
    %v22 = vld [vmem:[%s0 + $0x8] sm:$0xff]
    %v23 = vld [vmem:[%s1] sm:$0xff]
    %v24 = vld [vmem:[%s1 + $0x8] sm:$0xf]
    %v25 = vld [vmem:[%s2] sm:$0x1]
    %v27 = vperm.slane %v25, 0
    %vm29 = vcmask 97280
    %v31 = vsel %vm29, %v21, 0
    %v34 = vsel %vm29, %v22, 0
    %vm36 = vcmask 1043456
    %v38 = vsel %vm36, %v24, 0
    %40 = vmatpush.msra.mxu0 0.0
    %41 = vmatpush.msra.mxu0 0.0
    %42 = vmatpush.msra.mxu0 0.0
    %43 = vmatpush.msra.mxu0 0.0
    %44 = vmatpush.msra.mxu0 0.0
    %45 = vmatpush.msra.mxu0 0.0
    %46 = vmatpush.msra.mxu0 0.0
    %47 = vmatpush.msra.mxu0 0.0
    %48 = vmatpush.msra.mxu0 0.0
    %49 = vmatpush.msra.mxu0 0.0
    %50 = vmatpush.msra.mxu0 0.0
    %51 = vmatpush.msra.mxu0 0.0
    %52 = vmatpush.msra.mxu0 0.0
    %53 = vmatpush.msra.mxu0 0.0
    %54 = vmatpush.msra.mxu0 %v38
    %55 = vmatpush.msra.mxu0 %v23
    %56 = vmatmul.f32.gmra.mxu0 %v31
    %v57 = vpop.f32.mrf.mxu0
    %v58 = vadd.f32 %v27, %v57
    %59 = vmatmul.f32.gmra.mxu0 %v34
    %v60 = vpop.f32.mrf.mxu0
    %v61 = vadd.f32 %v27, %v60
    %62 = vdwg.mxu0
    %v63 = vtanh.pop %v58
    %v64 = vtanh.pop %v61
    %v65 = vld [vmem:[%s3] sm:$0xff]
    %v66 = vld [vmem:[%s3 + $0x8] sm:$0xff]
    %v67 = vld [vmem:[%s3 + $0x10] sm:$0xff]
    %v68 = vld [vmem:[%s3 + $0x18] sm:$0xff]
    %v69 = vld [vmem:[%s3 + $0x20] sm:$0xff]
    %v70 = vld [vmem:[%s3 + $0x28] sm:$0xff]
    %v71 = vld [vmem:[%s3 + $0x30] sm:$0xff]
    %v72 = vld [vmem:[%s3 + $0x38] sm:$0xff]
    %v73 = vld [vmem:[%s3 + $0x40] sm:$0xff]
    %v74 = vld [vmem:[%s3 + $0x48] sm:$0xff]
    %v75 = vld [vmem:[%s3 + $0x50] sm:$0xff]
    %v76 = vld [vmem:[%s3 + $0x58] sm:$0xff]
    %v77 = vld [vmem:[%s3 + $0x60] sm:$0xff]
    %v78 = vld [vmem:[%s3 + $0x68] sm:$0xff]
    %v79 = vld [vmem:[%s3 + $0x70] sm:$0xff]
    %v80 = vld [vmem:[%s3 + $0x78] sm:$0xff]
    %v81 = vld [vmem:[%s4] sm:$0x1]
    %v83 = vperm.slane %v81, 0
    %85 = vmatpush.msra.mxu0 %v80
    %86 = vmatpush.msra.mxu0 %v79
    %87 = vmatpush.msra.mxu0 %v78
    %88 = vmatpush.msra.mxu0 %v77
    %89 = vmatpush.msra.mxu0 %v76
    %90 = vmatpush.msra.mxu0 %v75
    %91 = vmatpush.msra.mxu0 %v74
    %92 = vmatpush.msra.mxu0 %v73
    %93 = vmatpush.msra.mxu0 %v72
    %94 = vmatpush.msra.mxu0 %v71
    %95 = vmatpush.msra.mxu0 %v70
    %96 = vmatpush.msra.mxu0 %v69
    %97 = vmatpush.msra.mxu0 %v68
    %98 = vmatpush.msra.mxu0 %v67
    %99 = vmatpush.msra.mxu0 %v66
    %100 = vmatpush.msra.mxu0 %v65
    %101 = vmatmul.f32.gmra.mxu0 %v63
    %v102 = vpop.f32.mrf.mxu0
    %v103 = vadd.f32 %v83, %v102
    %104 = vmatmul.f32.gmra.mxu0 %v64
    %v105 = vpop.f32.mrf.mxu0
    %v106 = vadd.f32 %v83, %v105
    %107 = vdwg.mxu0
    %vm108 = vcmask 64512
    %109 = vst.msk [vmem:[#allocation2] sm:$0xff] %vm108, %v103
    %110 = vst.msk [vmem:[#allocation2 + $0x8] sm:$0xff] %vm108, %v106
    // Predicated region
    $region22: #{dqn_forward.1} parent=1 // pred_check
      _
    $region23: #{dqn_forward.1} parent=1 // pred_check_branch
      %112 = sbr.rel (0) target = $region25
    $region24: #{dqn_forward.1} parent=1 // pred_region
      %114 = vsyncadd [#allocation3], 128
      %s115 = sshll.u32 [#allocation2], 4
      %s116 = int_to_ptr.vmem [resolvable:$true] %s115
      %s117 = sshll.u32 %s5, 4
      %s118 = int_to_ptr.hbm [resolvable:$true] %s117
      %123 = dma.vmem_to_hbm [thread:$0]  %s116, 128, %s118, [#allocation3], 128, 128, 8
    $region25: #{dqn_forward.1} parent=1 // pred_fallthru
      _
    // Predicated region
    $region26: #{dqn_forward.1} parent=1 // pred_check
      _
    $region27: #{dqn_forward.1} parent=1 // pred_check_branch
      %125 = sbr.rel (0) target = $region29
    $region28: #{dqn_forward.1} parent=1 // pred_region
      %127 = dma.done [#allocation3], 256
    $region29: #{dqn_forward.1} parent=1 // pred_fallthru
      _
    %128 = vsyncpa [#allocation3], 1

</llo_original>
